<compile_context>
chip_gen: v5e
topology: v5e:2x2
jax: 0.10.0
libtpu: 0.0.40
codegen_flags: <defaults>
</compile_context>

<pallas_src>
import functools
import math

import jax
import jax.numpy as jnp
import numpy as np
from jax.experimental import pallas as pl
from jax.experimental.pallas import tpu as pltpu

LANE = 128


def _round_up(n, m):
    return ((n + m - 1) // m) * m


def self_attention_kernel(x_ref, w_ref, b_ref, o_ref, *,
                          batch, seq, dk_pad, dv_pad, norm_fact):
    """Fused Self_Attention forward; all intermediates stay in VMEM/vregs.

    x_ref: (B*S, D_pad)              bf16, zero-padded along D
    w_ref: (D_pad, 2*dk_pad+dv_pad)  bf16, [Wq | Wk | Wv], zero-padded
    b_ref: (1, 2*dk_pad+dv_pad)      f32,  [bq | bk | bv], zero-padded
    o_ref: (B, S, dv_pad)            f32 output (padded lanes are zero)
    """
    n_pad = 2 * dk_pad + dv_pad

    # Fused Q/K/V projection: one lane-dense MXU matmul, f32 acc, fused bias.
    qkv = jnp.dot(x_ref[...], w_ref[...],
                  preferred_element_type=jnp.float32) + b_ref[...]
    qkv = qkv.reshape(batch, seq, n_pad)                  # sublane regroup only

    q = qkv[:, :, :dk_pad]                                # (B, S, dk_pad) f32
    k = qkv[:, :, dk_pad:2 * dk_pad]                      # (B, S, dk_pad) f32
    v = qkv[:, :, 2 * dk_pad:]                            # (B, S, dv_pad) f32

    # Scores: contract the shared last axis directly (no transpose of K),
    # bf16 MXU inputs, f32 accumulation.  Zero-padded dk lanes contribute 0.
    s = jnp.einsum('bqd,bkd->bqk',
                   q.astype(jnp.bfloat16), k.astype(jnp.bfloat16),
                   preferred_element_type=jnp.float32)    # (B, S, S)

    # Numerically stable softmax in f32; the module's post-softmax 1/sqrt(dk)
    # scale is folded into the approximate (EUP) reciprocal of the denominator
    # so only one full (S, S) multiply remains.
    m = jnp.max(s, axis=-1, keepdims=True)
    e = jnp.exp(s - m)
    denom = jnp.sum(e, axis=-1, keepdims=True)
    inv = pl.reciprocal(denom, approx=True) * norm_fact   # (B, S, 1)
    atten = e * inv                                       # (B, S, S)

    # Output: (B, S, S) @ (B, S, dv_pad) -> (B, S, dv_pad), lane-dense store.
    out = jnp.einsum('bqk,bkv->bqv',
                     atten.astype(jnp.bfloat16), v.astype(jnp.bfloat16),
                     preferred_element_type=jnp.float32)
    o_ref[...] = out.astype(o_ref.dtype)


def self_attention(x, wq, bq, wk, bk, wv, bv):
    """x: (B, S, D); w*: (D, dk|dv); b*: (dk|dv,) -> (B, S, dv) float32."""
    B, S, D = x.shape
    dk = wq.shape[1]
    dv = wv.shape[1]
    norm_fact = 1.0 / math.sqrt(dk)

    d_pad = _round_up(D, LANE)
    dk_pad = _round_up(dk, LANE)
    dv_pad = _round_up(dv, LANE)
    n_pad = 2 * dk_pad + dv_pad

    # ---- layout plumbing (wrapper side): lane-dense, zero-padded, bf16 ----
    x_p = jnp.pad(x, ((0, 0), (0, 0), (0, d_pad - D)))
    x2 = x_p.reshape(B * S, d_pad).astype(jnp.bfloat16)

    def pad_w(w, out_pad):
        return jnp.pad(w, ((0, d_pad - D), (0, out_pad - w.shape[1])))

    def pad_b(b, out_pad):
        return jnp.pad(b, ((0, out_pad - b.shape[0]),))

    w_cat = jnp.concatenate(
        [pad_w(wq, dk_pad), pad_w(wk, dk_pad), pad_w(wv, dv_pad)],
        axis=1).astype(jnp.bfloat16)                       # (d_pad, n_pad)
    b_cat = jnp.concatenate(
        [pad_b(bq, dk_pad), pad_b(bk, dk_pad), pad_b(bv, dv_pad)],
        axis=0).reshape(1, n_pad).astype(jnp.float32)      # (1, n_pad)

    kernel = functools.partial(self_attention_kernel,
                               batch=B, seq=S,
                               dk_pad=dk_pad, dv_pad=dv_pad,
                               norm_fact=norm_fact)

    flops = (2 * B * S * d_pad * n_pad        # fused QKV projection
             + 2 * B * S * S * dk_pad         # scores
             + 2 * B * S * S * dv_pad)        # atten @ V
    bytes_accessed = (x2.size * 2 + w_cat.size * 2 + b_cat.size * 4
                      + B * S * dv_pad * 4)
    cost = pl.CostEstimate(flops=flops,
                           transcendentals=B * S * S,
                           bytes_accessed=bytes_accessed)

    out_pad = pl.pallas_call(
        kernel,
        out_shape=jax.ShapeDtypeStruct((B, S, dv_pad), jnp.float32),
        # No grid: whole (tiny) problem in one kernel body, operands resident
        # in VMEM (single DMA each, no per-step pipeline overhead).
        in_specs=[
            pl.BlockSpec(memory_space=pltpu.MemorySpace.VMEM),   # x (B*S, D_pad)
            pl.BlockSpec(memory_space=pltpu.MemorySpace.VMEM),   # [Wq|Wk|Wv]
            pl.BlockSpec(memory_space=pltpu.MemorySpace.VMEM),   # [bq|bk|bv]
        ],
        out_specs=pl.BlockSpec(memory_space=pltpu.MemorySpace.VMEM),
        cost_estimate=cost,
        compiler_params=pltpu.CompilerParams(
            vmem_limit_bytes=32 * 1024 * 1024),
    )(x2, w_cat, b_cat)

    # Strip the zero-padded dv lanes.
    return out_pad[:, :, :dv]


def init_linear_params(key, in_dim, out_dim):
    """torch.nn.Linear default init: U[-1/sqrt(in_dim), +1/sqrt(in_dim)].

    Weight is stored pre-transposed as (in_dim, out_dim) for direct x @ W use.
    """
    kw, kb = jax.random.split(key)
    bound = 1.0 / np.sqrt(in_dim)
    w_torch = jax.random.uniform(kw, (out_dim, in_dim), jnp.float32,
                                 minval=-bound, maxval=bound)
    w = jnp.transpose(w_torch, (1, 0))                      # (in, out)
    b = jax.random.uniform(kb, (out_dim,), jnp.float32,
                           minval=-bound, maxval=bound)
    return w, b


class SelfAttentionPallas:
    """Pallas equivalent of Self_Attention(input_dim, dim_k, dim_v)."""

    def __init__(self, input_dim, dim_k, dim_v, key):
        kq, kk, kv = jax.random.split(key, 3)
        self.wq, self.bq = init_linear_params(kq, input_dim, dim_k)
        self.wk, self.bk = init_linear_params(kk, input_dim, dim_k)
        self.wv, self.bv = init_linear_params(kv, input_dim, dim_v)
        self.dim_k = dim_k

    def __call__(self, x):
        # x: (B, S, input_dim)
        return self_attention(x, self.wq, self.bq, self.wk, self.bk,
                              self.wv, self.bv)


def _reference(x, model):
    """Pure-JAX f32 reference mirroring the PyTorch forward exactly."""
    Q = x @ model.wq + model.bq
    K = x @ model.wk + model.bk
    V = x @ model.wv + model.bv
    scores = jnp.einsum('bsk,btk->bst', Q, K)
    atten = jax.nn.softmax(scores, axis=-1) * (1.0 / math.sqrt(model.dim_k))
    return jnp.einsum('bst,btv->bsv', atten, V)


if __name__ == "__main__":
    key = jax.random.PRNGKey(0)
    k_x, k_p = jax.random.split(key)

    # Small shapes consistent with the module.
    batch, seq_len, input_dim = 2, 16, 32
    dim_k, dim_v = 32, 32

    x = jax.random.normal(k_x, (batch, seq_len, input_dim), jnp.float32)

    model = SelfAttentionPallas(input_dim, dim_k, dim_v, k_p)
    out = jax.block_until_ready(model(x))

    assert out.shape == (batch, seq_len, dim_v), out.shape

    ref = jax.block_until_ready(_reference(x, model))
    # bf16 MXU inputs + approx reciprocal -> loosened tolerances vs f32 ref.
    np.testing.assert_allclose(np.asarray(out), np.asarray(ref),
                               rtol=5e-2, atol=2e-2)

    print("KERNEL_OK")
</pallas_src>

<mosaic_0001>
module attributes {stable_mosaic.version = 11 : i64} {
  func.func @self_attention_kernel(%arg0: memref<32x128xbf16, #tpu.memory_space<vmem>>, %arg1: memref<128x384xbf16, #tpu.memory_space<vmem>>, %arg2: memref<1x384xf32, #tpu.memory_space<vmem>>, %arg3: memref<2x16x128xf32, #tpu.memory_space<vmem>>) attributes {dimension_semantics = [], scalar_prefetch = 0 : i64, scratch_operands = 0 : i64, tpu.core_type = #tpu.core_type<tc>} {
    %c0 = arith.constant 0 : index
    %c0_0 = arith.constant 0 : index
    %0 = vector.load %arg0[%c0, %c0_0] : memref<32x128xbf16, #tpu.memory_space<vmem>>, vector<32x128xbf16>
    %c0_1 = arith.constant 0 : index
    %c0_2 = arith.constant 0 : index
    %1 = vector.load %arg1[%c0_1, %c0_2] : memref<128x384xbf16, #tpu.memory_space<vmem>>, vector<128x384xbf16>
    %cst = arith.constant dense<0.000000e+00> : vector<32x384xf32>
    %2 = tpu.matmul %0, %1, %cst {dimension_numbers = #tpu.dot_dimension_numbers<[1], [0], [0], [1], [0, 0, 1, 1], [], []>} : vector<32x128xbf16>, vector<128x384xbf16>, vector<32x384xf32> -> vector<32x384xf32>
    %c0_3 = arith.constant 0 : index
    %c0_4 = arith.constant 0 : index
    %3 = vector.load %arg2[%c0_3, %c0_4] : memref<1x384xf32, #tpu.memory_space<vmem>>, vector<1x384xf32>
    %4 = vector.broadcast %3 : vector<1x384xf32> to vector<32x384xf32>
    %5 = arith.addf %2, %4 : vector<32x384xf32>
    %6 = vector.shape_cast %5 : vector<32x384xf32> to vector<2x16x384xf32>
    %7 = vector.extract_strided_slice %6 {offsets = [0, 0, 0], sizes = [2, 16, 128], strides = [1, 1, 1]} : vector<2x16x384xf32> to vector<2x16x128xf32>
    %8 = vector.extract_strided_slice %6 {offsets = [0, 0, 128], sizes = [2, 16, 128], strides = [1, 1, 1]} : vector<2x16x384xf32> to vector<2x16x128xf32>
    %9 = vector.extract_strided_slice %6 {offsets = [0, 0, 256], sizes = [2, 16, 128], strides = [1, 1, 1]} : vector<2x16x384xf32> to vector<2x16x128xf32>
    %10 = arith.truncf %7 : vector<2x16x128xf32> to vector<2x16x128xbf16>
    %11 = arith.truncf %8 : vector<2x16x128xf32> to vector<2x16x128xbf16>
    "tpu.trace_start"() <{level = 10 : i32, message = "bqd,bkd->bqk"}> : () -> ()
    %cst_5 = arith.constant dense<0.000000e+00> : vector<2x16x16xf32>
    %12 = tpu.matmul %10, %11, %cst_5 {dimension_numbers = #tpu.dot_dimension_numbers<[2], [2], [1], [1], [0, 0, 0, 1, 1, 1], [0], [0]>} : vector<2x16x128xbf16>, vector<2x16x128xbf16>, vector<2x16x16xf32> -> vector<2x16x16xf32>
    "tpu.trace_stop"() : () -> ()
    %cst_6 = arith.constant dense<0xFF800000> : vector<2x16xf32>
    %13 = vector.multi_reduction <maximumf>, %12, %cst_6 [2] : vector<2x16x16xf32> to vector<2x16xf32>
    %14 = vector.shape_cast %13 : vector<2x16xf32> to vector<2x16x1xf32>
    %15 = vector.broadcast %14 : vector<2x16x1xf32> to vector<2x16x16xf32>
    %16 = arith.subf %12, %15 : vector<2x16x16xf32>
    %17 = math.exp %16 : vector<2x16x16xf32>
    %cst_7 = arith.constant dense<0.000000e+00> : vector<2x16xf32>
    %18 = vector.multi_reduction <add>, %17, %cst_7 [2] : vector<2x16x16xf32> to vector<2x16xf32>
    %19 = vector.shape_cast %18 : vector<2x16xf32> to vector<2x16x1xf32>
    %20 = tpu.reciprocal %19 {approx = true} : vector<2x16x1xf32> -> vector<2x16x1xf32>
    %cst_8 = arith.constant 0.176776692 : f32
    %21 = vector.broadcast %cst_8 : f32 to vector<2x16x1xf32>
    %22 = arith.mulf %20, %21 : vector<2x16x1xf32>
    %23 = vector.broadcast %22 : vector<2x16x1xf32> to vector<2x16x16xf32>
    %24 = arith.mulf %17, %23 : vector<2x16x16xf32>
    %25 = arith.truncf %24 : vector<2x16x16xf32> to vector<2x16x16xbf16>
    %26 = arith.truncf %9 : vector<2x16x128xf32> to vector<2x16x128xbf16>
    "tpu.trace_start"() <{level = 10 : i32, message = "bqk,bkv->bqv"}> : () -> ()
    %cst_9 = arith.constant dense<0.000000e+00> : vector<2x16x128xf32>
    %27 = tpu.matmul %25, %26, %cst_9 {dimension_numbers = #tpu.dot_dimension_numbers<[2], [1], [1], [2], [0, 0, 0, 1, 1, 2], [0], [0]>} : vector<2x16x16xbf16>, vector<2x16x128xbf16>, vector<2x16x128xf32> -> vector<2x16x128xf32>
    "tpu.trace_stop"() : () -> ()
    %c0_10 = arith.constant 0 : index
    %c0_11 = arith.constant 0 : index
    %c0_12 = arith.constant 0 : index
    %28 = vector.load %arg3[%c0_10, %c0_11, %c0_12] : memref<2x16x128xf32, #tpu.memory_space<vmem>>, vector<2x16x128xf32>
    tpu.vector_store %arg3[%c0_10, %c0_11, %c0_12], %27 {strides = array<i32>} : memref<2x16x128xf32, #tpu.memory_space<vmem>>, vector<2x16x128xf32>,
    return
  }
}

</mosaic_0001>

<llo_original>
// kernel: tpu_custom_call.1
$region0: #{tpu_custom_call.1}
  #allocation0 [shape = 'u32[]', space=smem, size = 0x4, offset = 0x4, fixed_abs, tag = 'smem constant byte address 0x4 - core index']
  #allocation1 [shape = 'u32[72,128]{1,0:T(1,128)}', space=vmem, size = 0x9000, scoped, tag = 'internal scratch']
  %s0 = inlined_call_operand.hbm [shape: bf16[32,128], index: 0, kind: input, shape index: {}]
  %s1 = inlined_call_operand.hbm [shape: bf16[128,384], index: 1, kind: input, shape index: {}]
  %s2 = inlined_call_operand.hbm [shape: f32[1,384], index: 2, kind: input, shape index: {}]
  %s3 = inlined_call_operand.hbm [shape: f32[2,16,128], index: 3, kind: output, shape index: {}]
  %s4 = sld [smem:[#allocation0]]
  $region34: #{tpu_custom_call.1} parent=0
    _
  %s6 = ssub.s32 1, %s4
  %s7 = scalar_select 0, %s6, %s4
  $region1: #{tpu_custom_call.1} parent=0
    #allocation2 [shape = 'u8[8192]{0}', space=vmem, size = 0x2000, scoped, tag = 'input window, operand 0, single buffered']
    #allocation3 [shape = 's32[1]{0}', space=sflag, size = 0x4, scoped, tag = 'scoped memory for tpu_custom_call.1']
    #allocation4 [shape = 's32[1]{0}', space=sflag, size = 0x4, scoped, tag = 'scoped memory for tpu_custom_call.1']
    #allocation5 [shape = 'u8[98304]{0}', space=vmem, size = 0x18000, scoped, tag = 'input window, operand 1, single buffered']
    #allocation6 [shape = 's32[1]{0}', space=sflag, size = 0x4, scoped, tag = 'scoped memory for tpu_custom_call.1']
    #allocation7 [shape = 'u8[1536]{0}', space=vmem, size = 0x800, scoped, tag = 'input window, operand 2, single buffered']
    #allocation8 [shape = 'u8[16384]{0}', space=vmem, size = 0x4000, scoped, tag = 'output window, operand 0, single buffered']
    %8 = vsyncpa [#allocation3], 0
    %9 = vsyncpa [#allocation6], 0
    %10 = vsyncpa [#allocation4], 0
    // Predicated region
    $region2: #{tpu_custom_call.1} parent=1 // pred_check
      _
    $region3: #{tpu_custom_call.1} parent=1 // pred_check_branch
      %12 = sbr.rel (0) target = $region5
    $region4: #{tpu_custom_call.1} parent=1 // pred_region
      %14 = vsyncadd [#allocation3], 0
      %s15 = sshll.u32 %s0, 4
      %s16 = int_to_ptr.hbm [resolvable:$true] %s15
      %s17 = sshll.u32 [#allocation2], 4
      %s18 = int_to_ptr.vmem [resolvable:$true] %s17
      %23 = dma.hbm_to_vmem [thread:$0]  %s16, 256, %s18, [#allocation3], 64, 64, 4
    $region5: #{tpu_custom_call.1} parent=1 // pred_fallthru
      _
    // Predicated region
    $region6: #{tpu_custom_call.1} parent=1 // pred_check
      _
    $region7: #{tpu_custom_call.1} parent=1 // pred_check_branch
      %25 = sbr.rel (0) target = $region9
    $region8: #{tpu_custom_call.1} parent=1 // pred_region
      %27 = vsyncadd [#allocation6], 0
      %s28 = sshll.u32 %s1, 4
      %s29 = int_to_ptr.hbm [resolvable:$true] %s28
      %s30 = sshll.u32 [#allocation5], 4
      %s31 = int_to_ptr.vmem [resolvable:$true] %s30
      %36 = dma.hbm_to_vmem [thread:$0]  %s29, 3072, %s31, [#allocation6], 192, 192, 12
    $region9: #{tpu_custom_call.1} parent=1 // pred_fallthru
      _
    // Predicated region
    $region10: #{tpu_custom_call.1} parent=1 // pred_check
      _
    $region11: #{tpu_custom_call.1} parent=1 // pred_check_branch
      %38 = sbr.rel (0) target = $region13
    $region12: #{tpu_custom_call.1} parent=1 // pred_region
      %40 = vsyncadd [#allocation6], 0
      %s42 = sshll.u32 %s2, 4
      %s43 = int_to_ptr.hbm [resolvable:$true] %s42
      %s44 = sshll.u32 [#allocation7], 4
      %s45 = int_to_ptr.vmem [resolvable:$true] %s44
      %47 = dma.hbm_to_vmem [thread:$0]  %s43, 48, %s45, [#allocation6]
    $region13: #{tpu_custom_call.1} parent=1 // pred_fallthru
      _
    // Predicated region
    $region14: #{tpu_custom_call.1} parent=1 // pred_check
      _
    $region15: #{tpu_custom_call.1} parent=1 // pred_check_branch
      %49 = sbr.rel (0) target = $region17
    $region16: #{tpu_custom_call.1} parent=1 // pred_region
      %51 = dma.done [#allocation3], 256
    $region17: #{tpu_custom_call.1} parent=1 // pred_fallthru
      _
    // Predicated region
    $region18: #{tpu_custom_call.1} parent=1 // pred_check
      _
    $region19: #{tpu_custom_call.1} parent=1 // pred_check_branch
      %53 = sbr.rel (0) target = $region21
    $region20: #{tpu_custom_call.1} parent=1 // pred_region
      %55 = dma.done [#allocation6], 3072
    $region21: #{tpu_custom_call.1} parent=1 // pred_fallthru
      _
    // Predicated region
    $region22: #{tpu_custom_call.1} parent=1 // pred_check
      _
    $region23: #{tpu_custom_call.1} parent=1 // pred_check_branch
      %57 = sbr.rel (0) target = $region25
    $region24: #{tpu_custom_call.1} parent=1 // pred_region
      %59 = dma.done [#allocation6], 48
    $region25: #{tpu_custom_call.1} parent=1 // pred_fallthru
      _
    %v61 = vld [vmem:[#allocation2] sm:$0xf]
    %v62 = vld [vmem:[#allocation2 + $0x4] sm:$0xf]
    %v63 = vld [vmem:[#allocation2 + $0x8] sm:$0xf]
    %v64 = vld [vmem:[#allocation2 + $0xc] sm:$0xf]
    %v65 = vld [vmem:[#allocation5] sm:$0xff]
    %v66 = vld [vmem:[#allocation5 + $0x8] sm:$0xf]
    %v67 = vld [vmem:[#allocation5 + $0xc] sm:$0xff]
    %v68 = vld [vmem:[#allocation5 + $0x14] sm:$0xf]
    %v69 = vld [vmem:[#allocation5 + $0x18] sm:$0xff]
    %v70 = vld [vmem:[#allocation5 + $0x20] sm:$0xf]
    %v71 = vld [vmem:[#allocation5 + $0x24] sm:$0xff]
    %v72 = vld [vmem:[#allocation5 + $0x2c] sm:$0xf]
    %v73 = vld [vmem:[#allocation5 + $0x30] sm:$0xff]
    %v74 = vld [vmem:[#allocation5 + $0x38] sm:$0xf]
    %v75 = vld [vmem:[#allocation5 + $0x3c] sm:$0xff]
    %v76 = vld [vmem:[#allocation5 + $0x44] sm:$0xf]
    %v77 = vld [vmem:[#allocation5 + $0x48] sm:$0xff]
    %v78 = vld [vmem:[#allocation5 + $0x50] sm:$0xf]
    %v79 = vld [vmem:[#allocation5 + $0x54] sm:$0xff]
    %v80 = vld [vmem:[#allocation5 + $0x5c] sm:$0xf]
    %v81 = vld [vmem:[#allocation5 + $0x60] sm:$0xff]
    %v82 = vld [vmem:[#allocation5 + $0x68] sm:$0xf]
    %v83 = vld [vmem:[#allocation5 + $0x6c] sm:$0xff]
    %v84 = vld [vmem:[#allocation5 + $0x74] sm:$0xf]
    %v85 = vld [vmem:[#allocation5 + $0x78] sm:$0xff]
    %v86 = vld [vmem:[#allocation5 + $0x80] sm:$0xf]
    %v87 = vld [vmem:[#allocation5 + $0x84] sm:$0xff]
    %v88 = vld [vmem:[#allocation5 + $0x8c] sm:$0xf]
    %v89 = vld [vmem:[#allocation5 + $0x90] sm:$0xff]
    %v90 = vld [vmem:[#allocation5 + $0x98] sm:$0xf]
    %v91 = vld [vmem:[#allocation5 + $0x9c] sm:$0xff]
    %v92 = vld [vmem:[#allocation5 + $0xa4] sm:$0xf]
    %v93 = vld [vmem:[#allocation5 + $0xa8] sm:$0xff]
    %v94 = vld [vmem:[#allocation5 + $0xb0] sm:$0xf]
    %v95 = vld [vmem:[#allocation5 + $0xb4] sm:$0xff]
    %v96 = vld [vmem:[#allocation5 + $0xbc] sm:$0xf]
    %v97 = vld [vmem:[#allocation7] sm:$0x7]
    %v99 = vperm.slane %v97, 0
    %v100 = vperm.slane %v97, 1
    %v101 = vperm.slane %v97, 2
    %v109 = vunpack.c.l.b16 %v61
    %v110 = vunpack.c.l.b16 %v62
    %v111 = vunpack.c.l.b16 %v63
    %v112 = vunpack.c.l.b16 %v64
    %v113 = vpack.c.b16 %v110, %v109
    %v114 = vpack.c.b16 %v112, %v111
    %v149 = vunpack.c.l.b16 %v65
    %v150 = vunpack.c.h.b16 %v65
    %v151 = vunpack.c.l.b16 %v66
    %v152 = vunpack.c.l.b16 %v67
    %v153 = vunpack.c.h.b16 %v67
    %v154 = vunpack.c.l.b16 %v68
    %v155 = vunpack.c.l.b16 %v69
    %v156 = vunpack.c.h.b16 %v69
    %v157 = vunpack.c.l.b16 %v70
    %v158 = vunpack.c.l.b16 %v71
    %v159 = vunpack.c.h.b16 %v71
    %v160 = vunpack.c.l.b16 %v72
    %v161 = vunpack.c.l.b16 %v73
    %v162 = vunpack.c.h.b16 %v73
    %v163 = vunpack.c.l.b16 %v74
    %v164 = vunpack.c.l.b16 %v75
    %v165 = vunpack.c.h.b16 %v75
    %v166 = vunpack.c.l.b16 %v76
    %v167 = vunpack.c.l.b16 %v77
    %v168 = vunpack.c.h.b16 %v77
    %v169 = vunpack.c.l.b16 %v78
    %v170 = vunpack.c.l.b16 %v79
    %v171 = vunpack.c.h.b16 %v79
    %v172 = vunpack.c.l.b16 %v80
    %v173 = vunpack.c.l.b16 %v81
    %v174 = vunpack.c.h.b16 %v81
    %v175 = vunpack.c.l.b16 %v82
    %v176 = vunpack.c.l.b16 %v83
    %v177 = vunpack.c.h.b16 %v83
    %v178 = vunpack.c.l.b16 %v84
    %v179 = vunpack.c.l.b16 %v85
    %v180 = vunpack.c.h.b16 %v85
    %v181 = vunpack.c.l.b16 %v86
    %v182 = vunpack.c.l.b16 %v87
    %v183 = vunpack.c.h.b16 %v87
    %v184 = vunpack.c.l.b16 %v88
    %v185 = vunpack.c.l.b16 %v89
    %v186 = vunpack.c.h.b16 %v89
    %v187 = vunpack.c.l.b16 %v90
    %v188 = vunpack.c.l.b16 %v91
    %v189 = vunpack.c.h.b16 %v91
    %v190 = vunpack.c.l.b16 %v92
    %v191 = vunpack.c.l.b16 %v93
    %v192 = vunpack.c.h.b16 %v93
    %v193 = vunpack.c.l.b16 %v94
    %v194 = vunpack.c.l.b16 %v95
    %v195 = vunpack.c.h.b16 %v95
    %v196 = vunpack.c.l.b16 %v96
    %v197 = vpack.c.b16 %v152, %v149
    %v198 = vpack.c.b16 %v153, %v150
    %v199 = vpack.c.b16 %v154, %v151
    %v200 = vpack.c.b16 %v158, %v155
    %v201 = vpack.c.b16 %v159, %v156
    %v202 = vpack.c.b16 %v160, %v157
    %v203 = vpack.c.b16 %v164, %v161
    %v204 = vpack.c.b16 %v165, %v162
    %v205 = vpack.c.b16 %v166, %v163
    %v206 = vpack.c.b16 %v170, %v167
    %v207 = vpack.c.b16 %v171, %v168
    %v208 = vpack.c.b16 %v172, %v169
    %v209 = vpack.c.b16 %v176, %v173
    %v210 = vpack.c.b16 %v177, %v174
    %v211 = vpack.c.b16 %v178, %v175
    %v212 = vpack.c.b16 %v182, %v179
    %v213 = vpack.c.b16 %v183, %v180
    %v214 = vpack.c.b16 %v184, %v181
    %v215 = vpack.c.b16 %v188, %v185
    %v216 = vpack.c.b16 %v189, %v186
    %v217 = vpack.c.b16 %v190, %v187
    %v218 = vpack.c.b16 %v194, %v191
    %v219 = vpack.c.b16 %v195, %v192
    %v220 = vpack.c.b16 %v196, %v193
    %245 = vmatpush.bf16.msra.mxu0 %v218
    %246 = vmatpush.bf16.msra.mxu0 %v215
    %247 = vmatpush.bf16.msra.mxu0 %v212
    %248 = vmatpush.bf16.msra.mxu0 %v209
    %249 = vmatpush.bf16.msra.mxu0 %v206
    %250 = vmatpush.bf16.msra.mxu0 %v203
    %251 = vmatpush.bf16.msra.mxu0 %v200
    %252 = vmatpush.bf16.msra.mxu0 %v197
    %253 = vmatmul.bf16.gmra.mxu0 %v113
    %v254 = vpop.f32.mrf.mxu0
    %v255 = vadd.f32 %v99, %v254
    %v256 = vpop.f32.mrf.mxu0
    %v257 = vadd.f32 %v99, %v256
    %258 = vmatmul.bf16.gmra.mxu0 %v114
    %v259 = vpop.f32.mrf.mxu0
    %v260 = vadd.f32 %v99, %v259
    %v261 = vpop.f32.mrf.mxu0
    %v262 = vadd.f32 %v99, %v261
    %263 = vdwg.mxu0
    %264 = vmatpush.bf16.msra.mxu0 %v219
    %265 = vmatpush.bf16.msra.mxu0 %v216
    %266 = vmatpush.bf16.msra.mxu0 %v213
    %267 = vmatpush.bf16.msra.mxu0 %v210
    %268 = vmatpush.bf16.msra.mxu0 %v207
    %269 = vmatpush.bf16.msra.mxu0 %v204
    %270 = vmatpush.bf16.msra.mxu0 %v201
    %271 = vmatpush.bf16.msra.mxu0 %v198
    %272 = vmatmul.bf16.gmra.mxu0 %v113
    %v273 = vpop.f32.mrf.mxu0
    %v274 = vadd.f32 %v100, %v273
    %v275 = vpop.f32.mrf.mxu0
    %v276 = vadd.f32 %v100, %v275
    %277 = vmatmul.bf16.gmra.mxu0 %v114
    %v278 = vpop.f32.mrf.mxu0
    %v279 = vadd.f32 %v100, %v278
    %v280 = vpop.f32.mrf.mxu0
    %v281 = vadd.f32 %v100, %v280
    %282 = vdwg.mxu0
    %283 = vmatpush.bf16.msra.mxu0 %v220
    %284 = vmatpush.bf16.msra.mxu0 %v217
    %285 = vmatpush.bf16.msra.mxu0 %v214
    %286 = vmatpush.bf16.msra.mxu0 %v211
    %287 = vmatpush.bf16.msra.mxu0 %v208
    %288 = vmatpush.bf16.msra.mxu0 %v205
    %289 = vmatpush.bf16.msra.mxu0 %v202
    %290 = vmatpush.bf16.msra.mxu0 %v199
    %291 = vmatmul.bf16.gmra.mxu0 %v113
    %v292 = vpop.f32.mrf.mxu0
    %v293 = vadd.f32 %v101, %v292
    %v294 = vpop.f32.mrf.mxu0
    %v295 = vadd.f32 %v101, %v294
    %296 = vmatmul.bf16.gmra.mxu0 %v114
    %v297 = vpop.f32.mrf.mxu0
    %v298 = vadd.f32 %v101, %v297
    %v299 = vpop.f32.mrf.mxu0
    %v300 = vadd.f32 %v101, %v299
    %301 = vdwg.mxu0
    %v302 = vpack.c.bf16 %v255, %v255
    %v303 = vpack.c.bf16 %v257, %v257
    %v304 = vpack.c.bf16 %v260, %v260
    %v305 = vpack.c.bf16 %v262, %v262
    %v306 = vpack.c.bf16 %v274, %v274
    %v307 = vpack.c.bf16 %v276, %v276
    %v308 = vpack.c.bf16 %v279, %v279
    %v309 = vpack.c.bf16 %v281, %v281
    %v312 = vunpack.c.l.b16 %v302
    %v313 = vunpack.c.l.b16 %v303
    %v314 = vpack.c.b16 %v313, %v312
    %v318 = vunpack.c.l.b16 %v306
    %v319 = vunpack.c.l.b16 %v307
    %v320 = vpack.c.b16 %v319, %v318
    %322 = vmatpush.bf16.xpose.msra.mxu0 0
    %323 = vmatpush.bf16.xpose.msra.mxu0 0
    %324 = vmatpush.bf16.xpose.msra.mxu0 0
    %325 = vmatpush.bf16.xpose.msra.mxu0 0
    %326 = vmatpush.bf16.xpose.msra.mxu0 0
    %327 = vmatpush.bf16.xpose.msra.mxu0 0
    %328 = vmatpush.bf16.xpose.msra.mxu0 0
    %329 = vmatpush.bf16.xpose.msra.mxu0 %v320
    %330 = vmatmul.bf16.gmra.mxu0 %v314
    %v331 = vpop.f32.mrf.mxu0
    %v332 = vadd.f32 0.0, %v331
    %v333 = vpop.f32.mrf.mxu0
    %v334 = vadd.f32 0.0, %v333
    %335 = vdwg.mxu0
    %v338 = vunpack.c.l.b16 %v304
    %v339 = vunpack.c.l.b16 %v305
    %v340 = vpack.c.b16 %v339, %v338
    %v344 = vunpack.c.l.b16 %v308
    %v345 = vunpack.c.l.b16 %v309
    %v346 = vpack.c.b16 %v345, %v344
    %348 = vmatpush.bf16.xpose.msra.mxu0 0
    %349 = vmatpush.bf16.xpose.msra.mxu0 0
    %350 = vmatpush.bf16.xpose.msra.mxu0 0
    %351 = vmatpush.bf16.xpose.msra.mxu0 0
    %352 = vmatpush.bf16.xpose.msra.mxu0 0
    %353 = vmatpush.bf16.xpose.msra.mxu0 0
    %354 = vmatpush.bf16.xpose.msra.mxu0 0
    %355 = vmatpush.bf16.xpose.msra.mxu0 %v346
    %356 = vmatmul.bf16.gmra.mxu0 %v340
    %v357 = vpop.f32.mrf.mxu0
    %v358 = vadd.f32 0.0, %v357
    %v359 = vpop.f32.mrf.mxu0
    %v360 = vadd.f32 0.0, %v359
    %361 = vdwg.mxu0
    %vm362 = vcmask 130048
    %v363 = vsel %vm362, %v332, -inf
    %364 = vmax.xlane.f32.xlu0 %v363
    %v365 = vpop.xlane.xlu0 %364
    %v366 = vsel %vm362, %v334, -inf
    %367 = vmax.xlane.f32.xlu0 %v366
    %v368 = vpop.xlane.xlu0 %367
    %v369 = vsel %vm362, %v358, -inf
    %370 = vmax.xlane.f32.xlu0 %v369
    %v371 = vpop.xlane.xlu0 %370
    %v372 = vsel %vm362, %v360, -inf
    %373 = vmax.xlane.f32.xlu0 %v372
    %v374 = vpop.xlane.xlu0 %373
    %v375 = vsub.f32 %v332, %v365
    %v376 = vsub.f32 %v334, %v368
    %v377 = vsub.f32 %v358, %v371
    %v378 = vsub.f32 %v360, %v374
    %v379 = vmul.f32 %v375, 1.442695
    %v380 = vpow.pop %v379
    %v381 = vmul.f32 %v376, 1.442695
    %v382 = vpow.pop %v381
    %v383 = vmul.f32 %v377, 1.442695
    %v384 = vpow.pop %v383
    %v385 = vmul.f32 %v378, 1.442695
    %v386 = vpow.pop %v385
    %v387 = vsel %vm362, %v380, 0.0
    %388 = vadd.xlane.f32.xlu0 %v387
    %v389 = vpop.xlane.xlu0 %388
    %v390 = vsel %vm362, %v382, 0.0
    %391 = vadd.xlane.f32.xlu0 %v390
    %v392 = vpop.xlane.xlu0 %391
    %v393 = vsel %vm362, %v384, 0.0
    %394 = vadd.xlane.f32.xlu0 %v393
    %v395 = vpop.xlane.xlu0 %394
    %v396 = vsel %vm362, %v386, 0.0
    %397 = vadd.xlane.f32.xlu0 %v396
    %v398 = vpop.xlane.xlu0 %397
    %v399 = vrcp.pop %v389
    %v400 = vrcp.pop %v392
    %v401 = vrcp.pop %v395
    %v402 = vrcp.pop %v398
    %v403 = vmul.f32 %v399, 0.17677669
    %v404 = vmul.f32 %v400, 0.17677669
    %v405 = vmul.f32 %v401, 0.17677669
    %v406 = vmul.f32 %v402, 0.17677669
    %v407 = vmul.f32 %v380, %v403
    %v408 = vmul.f32 %v382, %v404
    %v409 = vmul.f32 %v384, %v405
    %v410 = vmul.f32 %v386, %v406
    %v411 = vpack.c.bf16 %v407, %v407
    %v412 = vpack.c.bf16 %v408, %v408
    %v413 = vpack.c.bf16 %v409, %v409
    %v414 = vpack.c.bf16 %v410, %v410
    %v415 = vpack.c.bf16 %v293, %v293
    %v416 = vpack.c.bf16 %v295, %v295
    %v417 = vpack.c.bf16 %v298, %v298
    %v418 = vpack.c.bf16 %v300, %v300
    %v421 = vunpack.c.l.b16 %v411
    %v422 = vunpack.c.l.b16 %v412
    %v423 = vpack.c.b16 %v422, %v421
    %v426 = vunpack.c.l.b16 %v415
    %v427 = vunpack.c.l.b16 %v416
    %v428 = vpack.c.b16 %v427, %v426
    %v431 = vsel %vm362, %v423, 0
    %433 = vmatpush.bf16.msra.mxu0 0
    %434 = vmatpush.bf16.msra.mxu0 0
    %435 = vmatpush.bf16.msra.mxu0 0
    %436 = vmatpush.bf16.msra.mxu0 0
    %437 = vmatpush.bf16.msra.mxu0 0
    %438 = vmatpush.bf16.msra.mxu0 0
    %439 = vmatpush.bf16.msra.mxu0 0
    %440 = vmatpush.bf16.msra.mxu0 %v428
    %441 = vmatmul.bf16.gmra.mxu0 %v431
    %v442 = vpop.f32.mrf.mxu0
    %v443 = vadd.f32 0.0, %v442
    %v444 = vpop.f32.mrf.mxu0
    %v445 = vadd.f32 0.0, %v444
    %446 = vdwg.mxu0
    %v449 = vunpack.c.l.b16 %v413
    %v450 = vunpack.c.l.b16 %v414
    %v451 = vpack.c.b16 %v450, %v449
    %v454 = vunpack.c.l.b16 %v417
    %v455 = vunpack.c.l.b16 %v418
    %v456 = vpack.c.b16 %v455, %v454
    %v459 = vsel %vm362, %v451, 0
    %461 = vmatpush.bf16.msra.mxu0 0
    %462 = vmatpush.bf16.msra.mxu0 0
    %463 = vmatpush.bf16.msra.mxu0 0
    %464 = vmatpush.bf16.msra.mxu0 0
    %465 = vmatpush.bf16.msra.mxu0 0
    %466 = vmatpush.bf16.msra.mxu0 0
    %467 = vmatpush.bf16.msra.mxu0 0
    %468 = vmatpush.bf16.msra.mxu0 %v456
    %469 = vmatmul.bf16.gmra.mxu0 %v459
    %v470 = vpop.f32.mrf.mxu0
    %v471 = vadd.f32 0.0, %v470
    %v472 = vpop.f32.mrf.mxu0
    %v473 = vadd.f32 0.0, %v472
    %474 = vdwg.mxu0
    %475 = vst [vmem:[#allocation8] sm:$0xff] %v443
    %476 = vst [vmem:[#allocation8 + $0x8] sm:$0xff] %v445
    %477 = vst [vmem:[#allocation8 + $0x10] sm:$0xff] %v471
    %478 = vst [vmem:[#allocation8 + $0x18] sm:$0xff] %v473
    // Predicated region
    $region26: #{tpu_custom_call.1} parent=1 // pred_check
      _
    $region27: #{tpu_custom_call.1} parent=1 // pred_check_branch
      %480 = sbr.rel (0) target = $region29
    $region28: #{tpu_custom_call.1} parent=1 // pred_region
      %482 = vsyncadd [#allocation4], 0
      %s483 = sshll.u32 [#allocation8], 4
      %s484 = int_to_ptr.vmem [resolvable:$true] %s483
      %s485 = sshll.u32 %s3, 4
      %s486 = int_to_ptr.hbm [resolvable:$true] %s485
      %491 = dma.vmem_to_hbm [thread:$0]  %s484, 512, %s486, [#allocation4], 128, 128, 8
    $region29: #{tpu_custom_call.1} parent=1 // pred_fallthru
      _
    // Predicated region
    $region30: #{tpu_custom_call.1} parent=1 // pred_check
      _
    $region31: #{tpu_custom_call.1} parent=1 // pred_check_branch
      %493 = sbr.rel (0) target = $region33
    $region32: #{tpu_custom_call.1} parent=1 // pred_region
      %495 = dma.done [#allocation4], 512
    $region33: #{tpu_custom_call.1} parent=1 // pred_fallthru
      _
    %496 = vsyncpa [#allocation3], 1
    %497 = vsyncpa [#allocation6], 1
    %498 = vsyncpa [#allocation4], 1

</llo_original>
